<compile_context>
chip_gen: v6e
topology: v6e:2x2x1
jax: 0.10.0
libtpu: 0.0.40
codegen_flags: <defaults>
</compile_context>

<pallas_src>
import math

import jax
import jax.numpy as jnp
from jax.experimental import pallas as pl
from jax.experimental.pallas import tpu as pltpu


_MIN_PALLAS_BYTES = 256 * 1024       # below this, use plain XLA
_MAX_DENSE_ROW_BYTES = 256 * 1024    # cap on the lane-dense row length L
_MAX_LANE_TILE_BYTES = 512 * 1024    # per-row bytes above which lanes are tiled


def _cdiv(a, b):
    return -(-a // b)


def _layer_scale_kernel(x_ref, w_ref, o_ref):
    # x_ref: (tm, tl) tile; w_ref: (1, tl) per-lane scale or (tm, 1) per-row
    # scale - jnp broadcasting covers both.  Single VPU multiply; the kernel
    # is HBM/DMA-bound so no further in-kernel work is useful.
    out_dtype = o_ref.dtype
    o_ref[...] = x_ref[...].astype(out_dtype) * w_ref[...].astype(out_dtype)


def _target_step_bytes():
    """Combined (input + output) VMEM bytes per grid step, per TPU generation."""
    try:
        kind = jax.devices()[0].device_kind.lower()
    except Exception:
        return 8 << 20
    if "v5 lite" in kind or "v5e" in kind or "v5lite" in kind:
        return 4 << 20    # ~820 GB/s: 2 MiB-in/2 MiB-out already amortizes step cost
    if "v7" in kind:
        return 16 << 20   # ~3.2 TB/s: bigger tiles amortize the ~0.35us/step overhead
    return 8 << 20        # v6e and default


def _scale_2d_pallas(x2, w2, out_dtype, target_step_bytes):
    """y2[r, c] = x2[r, c] * w2 with w2 of shape (1, cols) or (rows, 1)."""
    rows, cols = x2.shape
    in_item = jnp.dtype(x2.dtype).itemsize
    out_item = jnp.dtype(out_dtype).itemsize
    sublane = max(8, 32 // in_item)   # 8 for f32, 16 for bf16, 32 for int8/fp8

    # Lane (last-axis) tiling: full extent unless a single row is very wide.
    if cols * in_item <= _MAX_LANE_TILE_BYTES:
        tl = cols
    else:
        tl = max(128, (_MAX_LANE_TILE_BYTES // in_item) // 128 * 128)
    grid_cols = _cdiv(cols, tl)

    # Row tiling: hit the per-step byte budget (input tile + output tile).
    row_bytes = tl * (in_item + out_item)
    tm = max(sublane, (target_step_bytes // row_bytes) // sublane * sublane)
    if grid_cols == 1 and rows > sublane:
        # Keep >= 2 grid steps so both v7x TensorCores get work.
        tm = min(tm, max(sublane, ((rows + 1) // 2) // sublane * sublane))
    if tm >= rows:
        tm = rows  # single full-extent row block
    grid_rows = _cdiv(rows, tm)  # ragged last block handled by Pallas masking

    if w2.shape[0] == 1:
        # Per-lane scale (channels_last), broadcast over sublanes.
        w_spec = pl.BlockSpec((1, tl), lambda i, j: (0, j))
    else:
        # Per-row scale (channels_first), broadcast over lanes.
        w_spec = pl.BlockSpec((tm, 1), lambda i, j: (i, 0))

    step_bytes = tm * tl * (in_item + out_item)
    w_bytes = int(w2.size) * jnp.dtype(w2.dtype).itemsize
    # 2x double-buffered in+out tiles + weight + slack.
    vmem_limit = int(min(56 << 20,
                         max(16 << 20, 2 * step_bytes + 2 * w_bytes + (4 << 20))))

    return pl.pallas_call(
        _layer_scale_kernel,
        out_shape=jax.ShapeDtypeStruct((rows, cols), out_dtype),
        grid_spec=pltpu.PrefetchScalarGridSpec(
            num_scalar_prefetch=0,
            grid=(grid_rows, grid_cols),
            in_specs=[
                pl.BlockSpec((tm, tl), lambda i, j: (i, j)),
                w_spec,
            ],
            out_specs=pl.BlockSpec((tm, tl), lambda i, j: (i, j)),
        ),
        compiler_params=pltpu.CompilerParams(
            dimension_semantics=("parallel", "parallel"),
            vmem_limit_bytes=vmem_limit,
        ),
    )(x2, w2)


def _layer_scale_channels_last(x, weight, target_step_bytes):
    orig_shape = x.shape
    dim = orig_shape[-1]
    total = x.size
    out_dtype = jnp.promote_types(x.dtype, weight.dtype)
    itemsize = jnp.dtype(x.dtype).itemsize

    # Lane-dense 2-D view (rows, L): need L % dim == 0 (scale is periodic in
    # dim along the flat array) and total % L == 0 (zero-copy reshape, no pad).
    base = (dim * 128) // math.gcd(dim, 128)
    if total % base == 0 and base * itemsize <= _MAX_DENSE_ROW_BYTES:
        L = base
        while (L < 512 and total % (2 * L) == 0
               and 2 * L * itemsize <= _MAX_DENSE_ROW_BYTES):
            L *= 2
        w_row = jnp.tile(weight, L // dim).reshape(1, L)
    else:
        # Last resort: channel axis straight on the lane axis.  Still a
        # zero-copy reshape (no pad / slice / transpose); only cost is masked
        # stores when dim % 128 != 0.
        L = dim
        w_row = weight.reshape(1, dim)

    x2 = x.reshape(total // L, L)
    out = _scale_2d_pallas(x2, w_row, out_dtype, target_step_bytes)
    return out.reshape(orig_shape)


def _layer_scale_channels_first(x, weight, target_step_bytes):
    if x.ndim <= 2:
        # With no spatial dims the channel axis is the last axis.
        return _layer_scale_channels_last(x, weight, target_step_bytes)
    orig_shape = x.shape
    b, c = orig_shape[0], orig_shape[1]
    spatial = math.prod(orig_shape[2:])
    out_dtype = jnp.promote_types(x.dtype, weight.dtype)

    # (B, C, *spatial) -> (B*C, spatial) is a free reshape; row r has channel
    # r % C, so a length-(B*C) tiled weight gives the per-row scale.  No
    # moveaxis / transpose of x anywhere.
    x2 = x.reshape(b * c, spatial)
    w_rows = jnp.tile(weight, b).reshape(b * c, 1)
    out = _scale_2d_pallas(x2, w_rows, out_dtype, target_step_bytes)
    return out.reshape(orig_shape)


def layer_scale(x, weight, data_format="channels_last"):
    """LayerScale forward: y = x * weight broadcast on the channel axis."""
    x = jnp.asarray(x)
    weight = jnp.asarray(weight)

    if data_format == "channels_first" and x.ndim > 2:
        dim = x.shape[1]
    else:
        dim = x.shape[-1]
    assert weight.shape == (dim,), (weight.shape, dim)

    total_bytes = x.size * jnp.dtype(x.dtype).itemsize
    if total_bytes < _MIN_PALLAS_BYTES:
        # Tiny tensor: pallas_call + wrapper plumbing would dominate; XLA
        # fuses this trivially.
        if data_format == "channels_first" and x.ndim > 2:
            shape = (1, -1) + (1,) * (x.ndim - 2)
        else:
            shape = (1,) * (x.ndim - 1) + (-1,)
        return x * weight.reshape(shape)

    target_step_bytes = _target_step_bytes()
    if data_format == "channels_first":
        return _layer_scale_channels_first(x, weight, target_step_bytes)
    return _layer_scale_channels_last(x, weight, target_step_bytes)


if __name__ == "__main__":
    key = jax.random.PRNGKey(0)
    scale = 1e-05

    def ref(x, w, data_format):
        if data_format == "channels_first" and x.ndim > 2:
            shape = (1, -1) + (1,) * (x.ndim - 2)
        else:
            shape = (1,) * (x.ndim - 1) + (-1,)
        return x * w.reshape(shape)

    tests = [
        # (shape, data_format, dtype)
        ((2, 8, 32), "channels_last", jnp.float32),       # tiny -> XLA fast path
        ((2, 4, 16, 16), "channels_first", jnp.float32),  # tiny -> XLA fast path
        ((4, 128, 192), "channels_last", jnp.float32),    # Pallas lane-dense path
        ((19, 79, 48), "channels_last", jnp.float32),     # Pallas (N, dim) fallback
        ((2, 96, 32, 32), "channels_first", jnp.float32), # Pallas channels_first path
        ((4, 256, 192), "channels_last", jnp.bfloat16),   # mixed dtype -> f32 output
    ]

    for t, (shape, fmt, dtype) in enumerate(tests):
        k = jax.random.fold_in(key, t)
        x = jax.random.normal(k, shape, dtype=jnp.float32).astype(dtype)
        if fmt == "channels_first" and len(shape) > 2:
            dim = shape[1]
        else:
            dim = shape[-1]
        # Module init: weight = ones(dim) * scale
        w = jnp.ones((dim,), dtype=jnp.float32) * scale

        y = jax.block_until_ready(layer_scale(x, w, data_format=fmt))
        y_ref = ref(x, w, fmt)

        assert y.shape == x.shape, (y.shape, x.shape)
        assert y.dtype == y_ref.dtype, (y.dtype, y_ref.dtype)
        assert jnp.allclose(y, y_ref, atol=1e-8, rtol=1e-4), (shape, fmt, str(dtype))

    print("KERNEL_OK")
</pallas_src>

<mosaic_0001>
module attributes {stable_mosaic.version = 11 : i64} {
  func.func @_layer_scale_kernel(%arg0: i32, %arg1: i32, %arg2: memref<64x768xf32, #tpu.memory_space<vmem>>, %arg3: memref<1x768xf32, #tpu.memory_space<vmem>>, %arg4: memref<64x768xf32, #tpu.memory_space<vmem>>) attributes {dimension_semantics = [#tpu.dimension_semantics<parallel>, #tpu.dimension_semantics<parallel>], iteration_bounds = array<i64: 2, 1>, scalar_prefetch = 0 : i64, scratch_operands = 0 : i64, tpu.core_type = #tpu.core_type<tc>, window_params = [{transform_indices = @transform_0, window_bounds = array<i64: 64, 768>}, {transform_indices = @transform_1, window_bounds = array<i64: 1, 768>}, {transform_indices = @transform_2, window_bounds = array<i64: 64, 768>}]} {
    %c0 = arith.constant 0 : index
    %c0_0 = arith.constant 0 : index
    %0 = vector.load %arg2[%c0, %c0_0] : memref<64x768xf32, #tpu.memory_space<vmem>>, vector<64x768xf32>
    %c0_1 = arith.constant 0 : index
    %c0_2 = arith.constant 0 : index
    %1 = vector.load %arg3[%c0_1, %c0_2] : memref<1x768xf32, #tpu.memory_space<vmem>>, vector<1x768xf32>
    %2 = vector.broadcast %1 : vector<1x768xf32> to vector<64x768xf32>
    %3 = arith.mulf %0, %2 : vector<64x768xf32>
    %c0_3 = arith.constant 0 : index
    %c0_4 = arith.constant 0 : index
    %4 = vector.load %arg4[%c0_3, %c0_4] : memref<64x768xf32, #tpu.memory_space<vmem>>, vector<64x768xf32>
    tpu.vector_store %arg4[%c0_3, %c0_4], %3 {strides = array<i32>} : memref<64x768xf32, #tpu.memory_space<vmem>>, vector<64x768xf32>,
    return
  }
  func.func @transform_0(%arg0: i32, %arg1: i32) -> (i32, i32) {
    %c0_i32 = arith.constant 0 : i32
    return %arg0, %arg1 : i32, i32
  }
  func.func @transform_1(%arg0: i32, %arg1: i32) -> (i32, i32) {
    %c0_i32 = arith.constant 0 : i32
    %c0_i32_0 = arith.constant 0 : i32
    return %c0_i32, %arg1 : i32, i32
  }
  func.func @transform_2(%arg0: i32, %arg1: i32) -> (i32, i32) {
    %c0_i32 = arith.constant 0 : i32
    return %arg0, %arg1 : i32, i32
  }
}

</mosaic_0001>

<llo_original>
// kernel: tpu_custom_call.1
$region0: #{tpu_custom_call.1}
  #allocation0 [shape = 'u32[]', space=smem, size = 0x4, offset = 0x4, fixed_abs, tag = 'smem constant byte address 0x4 - core index']
  #allocation1 [shape = 'u32[144,128]{1,0:T(1,128)}', space=vmem, size = 0x12000, scoped, tag = 'internal scratch']
  %s0 = inlined_call_operand.hbm [shape: f32[128,768], index: 0, kind: input, shape index: {}]
  %s1 = inlined_call_operand.hbm [shape: f32[1,768], index: 1, kind: input, shape index: {}]
  %s2 = inlined_call_operand.hbm [shape: f32[128,768], index: 2, kind: output, shape index: {}]
  %s3 = sld [smem:[#allocation0]]
  $region49: #{tpu_custom_call.1} parent=0
    _
  %s5 = ssub.s32 1, %s3
  %s6 = scalar_select 0, %s5, %s3
  $region1: #{tpu_custom_call.1} parent=0
    #allocation2 [shape = 'u8[393216]{0}', space=vmem, size = 0x60000, scoped, tag = 'input window, operand 0']
    #allocation3 [shape = 's32[2]{0}', space=sflag, size = 0x8, scoped, tag = 'scoped memory for tpu_custom_call.1']
    #allocation4 [shape = 's32[2]{0}', space=sflag, size = 0x8, scoped, tag = 'scoped memory for tpu_custom_call.1']
    #allocation5 [shape = 'u8[3072]{0}', space=vmem, size = 0xc00, scoped, tag = 'input window, operand 1, single buffered']
    #allocation6 [shape = 's32[1]{0}', space=sflag, size = 0x4, scoped, tag = 'scoped memory for tpu_custom_call.1']
    #allocation7 [shape = 'u8[393216]{0}', space=vmem, size = 0x60000, scoped, tag = 'output window, operand 0']
    %7 = vsyncpa [#allocation3], 0
    %s8 = scalar_lea.sflag [#allocation3], 1
    %9 = vsyncpa %s8, 0
    %10 = vsyncpa [#allocation6], 0
    %11 = vsyncpa [#allocation4], 0
    %s12 = scalar_lea.sflag [#allocation4], 1
    %13 = vsyncpa %s12, 0
    loop: start=0, step=1, limit=4
    $region2: #{tpu_custom_call.1} parent=1 // loop_pre_header
      _
    $region3: #{tpu_custom_call.1} parent=1 // loop_header
      %s15 = sphi 0, %s19
      %p16 = scmp.ge.s32.totalorder %s15, 4
      %s22 = sphi 0, %s34
      %s23 = sphi 0, %s30
      %s24 = sphi 0, %s22
      %s25 = sphi 0, %s23
      %s26 = sphi 0, %s24
      %s27 = sphi 0, %s25
      %s39 = sphi 0, %s41
      %s42 = sphi 0, %s39
      %s43 = sphi 0, %s42
      %s59 = sphi 0, %s43
      %s65 = sphi 0, %s67
      %s68 = sphi 0, %s65
      %s69 = sphi 0, %s68
      %s85 = sphi 0, %s69
      %s93 = sphi 0, %s95
      %s96 = sphi 0, %s93
      %s97 = sphi 0, %s96
      %s113 = sphi 0, %s97
    $region4: #{tpu_custom_call.1} parent=1 // loop_header_branch
      %18 = sbr.rel (%p16) target = $region8
    $region5: #{tpu_custom_call.1} parent=1 // loop_body
      %s20 = ssub.s32 %s15, 1
      %s21 = ssub.s32 %s15, 2
      %s28 = sadd.s32 1, %s23
      %p29 = scmp.ge.s32.totalorder %s28, 1
      %s30 = scalar_select %p29, 0, %s28
      %s31 = sadd.s32 1, %s22
      %s32 = scalar_select %p29, %s31, %s22
      %p33 = scmp.ge.s32.totalorder %s32, 2
      %s34 = scalar_select %p33, 0, %s32
      %s35 = ssub.s32 %s22, %s34
      %s36 = ssub.s32 %s23, %s30
      %s37 = sor.u32 %s35, %s36
      %p38 = scmp.eq.s32.totalorder %s37, 0
      %s40 = sadd.s32 %s39, 1
      %s41 = scalar_select %p38, %s39, %s40
      %p44 = pneg %p38
      %p45 = scmp.eq.s32.totalorder %s15, 1
      %p46 = por %p44, %p45
      %p47 = scmp.ne.s32.totalorder %s39, %s42
      %p48 = scmp.eq.s32.totalorder %s15, 0
      %p49 = por %p47, %p48
      %p50 = scmp.ne.s32.totalorder %s39, %s42
      %p51 = scmp.eq.s32.totalorder %s20, 1
      %p52 = por %p50, %p51
      %p53 = scmp.ne.s32.totalorder %s42, %s43
      %p54 = scmp.eq.s32.totalorder %s20, 0
      %p55 = por %p53, %p54
      %p56 = scmp.ne.s32.totalorder %s42, %s43
      %p57 = scmp.eq.s32.totalorder %s21, 1
      %p58 = por %p56, %p57
      %p60 = scmp.ne.s32.totalorder %s43, %s59
      %p61 = scmp.eq.s32.totalorder %s21, 0
      %p62 = por %p60, %p61
      %s63 = ssub.s32 %s23, %s30
      %p64 = scmp.eq.s32.totalorder %s63, 0
      %s66 = sadd.s32 %s65, 1
      %s67 = scalar_select %p64, %s65, %s66
      %p70 = pneg %p64
      %p71 = scmp.eq.s32.totalorder %s15, 1
      %p72 = por %p70, %p71
      %p73 = scmp.ne.s32.totalorder %s65, %s68
      %p74 = scmp.eq.s32.totalorder %s15, 0
      %p75 = por %p73, %p74
      %p76 = scmp.ne.s32.totalorder %s65, %s68
      %p77 = scmp.eq.s32.totalorder %s20, 1
      %p78 = por %p76, %p77
      %p79 = scmp.ne.s32.totalorder %s68, %s69
      %p80 = scmp.eq.s32.totalorder %s20, 0
      %p81 = por %p79, %p80
      %p82 = scmp.ne.s32.totalorder %s68, %s69
      %p83 = scmp.eq.s32.totalorder %s21, 1
      %p84 = por %p82, %p83
      %p86 = scmp.ne.s32.totalorder %s69, %s85
      %p87 = scmp.eq.s32.totalorder %s21, 0
      %p88 = por %p86, %p87
      %s89 = ssub.s32 %s22, %s34
      %s90 = ssub.s32 %s23, %s30
      %s91 = sor.u32 %s89, %s90
      %p92 = scmp.eq.s32.totalorder %s91, 0
      %s94 = sadd.s32 %s93, 1
      %s95 = scalar_select %p92, %s93, %s94
      %p98 = pneg %p92
      %p99 = scmp.eq.s32.totalorder %s15, 1
      %p100 = por %p98, %p99
      %p101 = scmp.ne.s32.totalorder %s93, %s96
      %p102 = scmp.eq.s32.totalorder %s15, 0
      %p103 = por %p101, %p102
      %p104 = scmp.ne.s32.totalorder %s93, %s96
      %p105 = scmp.eq.s32.totalorder %s20, 1
      %p106 = por %p104, %p105
      %p107 = scmp.ne.s32.totalorder %s96, %s97
      %p108 = scmp.eq.s32.totalorder %s20, 0
      %p109 = por %p107, %p108
      %p110 = scmp.ne.s32.totalorder %s96, %s97
      %p111 = scmp.eq.s32.totalorder %s21, 1
      %p112 = por %p110, %p111
      %p114 = scmp.ne.s32.totalorder %s97, %s113
      %p115 = scmp.eq.s32.totalorder %s21, 0
      %p116 = por %p114, %p115
      %p117 = scmp.le.s32.totalorder 1, %s15
      %p118 = scmp.lt.s32.totalorder %s15, 3
      %p119 = pnand %p117, %p118
      %p120 = pneg %p119
      // Predicated region
      $region9: #{tpu_custom_call.1} parent=5 // pred_check
        _
      $region10: #{tpu_custom_call.1} parent=5 // pred_check_branch
        %122 = sbr.rel (%p119) target = $region12
      $region11: #{tpu_custom_call.1} parent=5 // pred_region
        %s123 = ssub.s32 %s15, 1
        // Predicated region
        $region13: #{tpu_custom_call.1} parent=11 // pred_check
          %p124 = pneg %p81
        $region14: #{tpu_custom_call.1} parent=11 // pred_check_branch
          %126 = sbr.rel (%p124) target = $region16
        $region15: #{tpu_custom_call.1} parent=11 // pred_region
          %s127 = smul.u32 6, %s25
          %s129 = ssub.s32 96, 96
          %130 = vsyncadd [#allocation6], %s129
          %s131 = smul.addr %s127, 16
          %s132 = scalar_lea.hbm %s1, %s131
          %s134 = sshll.u32 [#allocation5], 4
          %s135 = int_to_ptr.vmem [resolvable:$true] %s134
          %137 = dma.hbm_to_vmem [thread:$0]  %s132, 96, %s135, [#allocation6]
        $region16: #{tpu_custom_call.1} parent=11 // pred_fallthru
          _
      $region12: #{tpu_custom_call.1} parent=5 // pred_fallthru
        _
      %p138 = scmp.lt.s32.totalorder %s15, 2
      // Predicated region
      $region17: #{tpu_custom_call.1} parent=5 // pred_check
        %p139 = pneg %p138
      $region18: #{tpu_custom_call.1} parent=5 // pred_check_branch
        %141 = sbr.rel (%p139) target = $region20
      $region19: #{tpu_custom_call.1} parent=5 // pred_region
        // Predicated region
        $region21: #{tpu_custom_call.1} parent=19 // pred_check
          %p142 = pneg %p49
        $region22: #{tpu_custom_call.1} parent=19 // pred_check_branch
          %144 = sbr.rel (%p142) target = $region24
        $region23: #{tpu_custom_call.1} parent=19 // pred_region
          %s145 = sand.u32 %s39, 1
          %s146 = scalar_lea.sflag [#allocation3], %s145
          %s147 = sand.u32 %s39, 1
          %s148 = smul.addr %s147, 384
          %s149 = scalar_lea.vmem [#allocation2], %s148
          %s150 = smul.u32 8, %s22
          %s151 = smul.u32 6, %s23
          %s153 = ssub.s32 6144, 6144
          %154 = vsyncadd %s146, %s153
          %s155 = smul.addr %s150, 6
          %s156 = sadd.s32 %s151, %s155
          %s157 = smul.addr %s156, 128
          %s158 = scalar_lea.hbm %s0, %s157
          %s159 = sshll.u32 %s149, 4
          %s160 = int_to_ptr.vmem [resolvable:$true] %s159
          %165 = dma.hbm_to_vmem [thread:$0]  %s158, 6144, %s160, %s146, 768, 768, 48
        $region24: #{tpu_custom_call.1} parent=19 // pred_fallthru
          _
      $region20: #{tpu_custom_call.1} parent=5 // pred_fallthru
        _
      %p166 = scmp.le.s32.totalorder 1, %s15
      %p167 = scmp.lt.s32.totalorder %s15, 3
      %p168 = pnand %p166, %p167
      %p169 = pneg %p168
      // Predicated region
      $region25: #{tpu_custom_call.1} parent=5 // pred_check
        _
      $region26: #{tpu_custom_call.1} parent=5 // pred_check_branch
        %171 = sbr.rel (%p168) target = $region28
      $region27: #{tpu_custom_call.1} parent=5 // pred_region
        %s172 = ssub.s32 %s15, 1
        %s173 = sand.u32 %s42, 1
        %s174 = scalar_lea.sflag [#allocation3], %s173
        %s175 = sand.u32 %s42, 1
        %s176 = smul.addr %s175, 384
        %s177 = scalar_lea.vmem [#allocation2], %s176
        // Predicated region
        $region29: #{tpu_custom_call.1} parent=27 // pred_check
          %p178 = pneg %p55
        $region30: #{tpu_custom_call.1} parent=27 // pred_check_branch
          %180 = sbr.rel (%p178) target = $region32
        $region31: #{tpu_custom_call.1} parent=27 // pred_region
          %181 = dma.done %s174, 6144
        $region32: #{tpu_custom_call.1} parent=27 // pred_fallthru
          _
        // Predicated region
        $region33: #{tpu_custom_call.1} parent=27 // pred_check
          %p182 = pneg %p81
        $region34: #{tpu_custom_call.1} parent=27 // pred_check_branch
          %184 = sbr.rel (%p182) target = $region36
        $region35: #{tpu_custom_call.1} parent=27 // pred_region
          %185 = dma.done [#allocation6], 96
        $region36: #{tpu_custom_call.1} parent=27 // pred_fallthru
          _
        %s186 = sand.u32 %s42, 1
        %s187 = scalar_lea.sflag [#allocation3], %s186
        %s188 = sand.u32 %s42, 1
        %s189 = smul.addr %s188, 384
        %s190 = scalar_lea.vmem [#allocation2], %s189
        %p191 = pneg %p55
        %p192 = pneg %p52
        %p193 = pneg %p81
        %p194 = pneg %p78
        %p195 = pneg %p109
        %p196 = pneg %p106
        %s197 = sand.u32 %s96, 1
        %s198 = scalar_lea.sflag [#allocation4], %s197
        %s199 = sand.u32 %s96, 1
        %s200 = smul.addr %s199, 384
        %s201 = scalar_lea.vmem [#allocation7], %s200
        %s202 = smul.u32 8, %s24
        %s203 = smul.u32 6, %s25
        %s204 = smul.u32 6, %s25
        %s205 = smul.u32 8, %s24
        %s206 = smul.u32 6, %s25
        %v207 = vld [vmem:[%s177] sm:$0xff]
        %v208 = vld [vmem:[%s177 + $0x8] sm:$0xff]
        %v209 = vld [vmem:[%s177 + $0x10] sm:$0xff]
        %v210 = vld [vmem:[%s177 + $0x18] sm:$0xff]
        %v211 = vld [vmem:[%s177 + $0x20] sm:$0xff]
        %v212 = vld [vmem:[%s177 + $0x28] sm:$0xff]
        %v213 = vld [vmem:[%s177 + $0x30] sm:$0xff]
        %v214 = vld [vmem:[%s177 + $0x38] sm:$0xff]
        %v215 = vld [vmem:[%s177 + $0x40] sm:$0xff]
        %v216 = vld [vmem:[%s177 + $0x48] sm:$0xff]
        %v217 = vld [vmem:[%s177 + $0x50] sm:$0xff]
        %v218 = vld [vmem:[%s177 + $0x58] sm:$0xff]
        %v219 = vld [vmem:[%s177 + $0x60] sm:$0xff]
        %v220 = vld [vmem:[%s177 + $0x68] sm:$0xff]
        %v221 = vld [vmem:[%s177 + $0x70] sm:$0xff]
        %v222 = vld [vmem:[%s177 + $0x78] sm:$0xff]
        %v223 = vld [vmem:[%s177 + $0x80] sm:$0xff]
        %v224 = vld [vmem:[%s177 + $0x88] sm:$0xff]
        %v225 = vld [vmem:[%s177 + $0x90] sm:$0xff]
        %v226 = vld [vmem:[%s177 + $0x98] sm:$0xff]
        %v227 = vld [vmem:[%s177 + $0xa0] sm:$0xff]
        %v228 = vld [vmem:[%s177 + $0xa8] sm:$0xff]
        %v229 = vld [vmem:[%s177 + $0xb0] sm:$0xff]
        %v230 = vld [vmem:[%s177 + $0xb8] sm:$0xff]
        %v231 = vld [vmem:[%s177 + $0xc0] sm:$0xff]
        %v232 = vld [vmem:[%s177 + $0xc8] sm:$0xff]
        %v233 = vld [vmem:[%s177 + $0xd0] sm:$0xff]
        %v234 = vld [vmem:[%s177 + $0xd8] sm:$0xff]
        %v235 = vld [vmem:[%s177 + $0xe0] sm:$0xff]
        %v236 = vld [vmem:[%s177 + $0xe8] sm:$0xff]
        %v237 = vld [vmem:[%s177 + $0xf0] sm:$0xff]
        %v238 = vld [vmem:[%s177 + $0xf8] sm:$0xff]
        %v239 = vld [vmem:[%s177 + $0x100] sm:$0xff]
        %v240 = vld [vmem:[%s177 + $0x108] sm:$0xff]
        %v241 = vld [vmem:[%s177 + $0x110] sm:$0xff]
        %v242 = vld [vmem:[%s177 + $0x118] sm:$0xff]
        %v243 = vld [vmem:[%s177 + $0x120] sm:$0xff]
        %v244 = vld [vmem:[%s177 + $0x128] sm:$0xff]
        %v245 = vld [vmem:[%s177 + $0x130] sm:$0xff]
        %v246 = vld [vmem:[%s177 + $0x138] sm:$0xff]
        %v247 = vld [vmem:[%s177 + $0x140] sm:$0xff]
        %v248 = vld [vmem:[%s177 + $0x148] sm:$0xff]
        %v249 = vld [vmem:[%s177 + $0x150] sm:$0xff]
        %v250 = vld [vmem:[%s177 + $0x158] sm:$0xff]
        %v251 = vld [vmem:[%s177 + $0x160] sm:$0xff]
        %v252 = vld [vmem:[%s177 + $0x168] sm:$0xff]
        %v253 = vld [vmem:[%s177 + $0x170] sm:$0xff]
        %v254 = vld [vmem:[%s177 + $0x178] sm:$0xff]
        %v255 = vld [vmem:[#allocation5] sm:$0x3f]
        %v257 = vlaneseq
        %v258 = vshrl.u32 %v257, 7
        %v259 = vsub.s32 0, %v258
        %v260 = vrot.slane %v255, %v259
        %v261 = vlaneseq
        %v262 = vshrl.u32 %v261, 7
        %v263 = vsub.s32 1, %v262
        %v264 = vrot.slane %v255, %v263
        %v265 = vlaneseq
        %v266 = vshrl.u32 %v265, 7
        %v267 = vsub.s32 2, %v266
        %v268 = vrot.slane %v255, %v267
        %v269 = vlaneseq
        %v270 = vshrl.u32 %v269, 7
        %v271 = vsub.s32 3, %v270
        %v272 = vrot.slane %v255, %v271
        %v273 = vlaneseq
        %v274 = vshrl.u32 %v273, 7
        %v275 = vsub.s32 4, %v274
        %v276 = vrot.slane %v255, %v275
        %v277 = vlaneseq
        %v278 = vshrl.u32 %v277, 7
        %v279 = vsub.s32 5, %v278
        %v280 = vrot.slane %v255, %v279
        %v287 = vmul.f32 %v207, %v260
        %v288 = vmul.f32 %v208, %v264
        %v289 = vmul.f32 %v209, %v268
        %v290 = vmul.f32 %v210, %v272
        %v291 = vmul.f32 %v211, %v276
        %v292 = vmul.f32 %v212, %v280
        %v293 = vmul.f32 %v213, %v260
        %v294 = vmul.f32 %v214, %v264
        %v295 = vmul.f32 %v215, %v268
        %v296 = vmul.f32 %v216, %v272
        %v297 = vmul.f32 %v217, %v276
        %v298 = vmul.f32 %v218, %v280
        %v299 = vmul.f32 %v219, %v260
        %v300 = vmul.f32 %v220, %v264
        %v301 = vmul.f32 %v221, %v268
        %v302 = vmul.f32 %v222, %v272
        %v303 = vmul.f32 %v223, %v276
        %v304 = vmul.f32 %v224, %v280
        %v305 = vmul.f32 %v225, %v260
        %v306 = vmul.f32 %v226, %v264
        %v307 = vmul.f32 %v227, %v268
        %v308 = vmul.f32 %v228, %v272
        %v309 = vmul.f32 %v229, %v276
        %v310 = vmul.f32 %v230, %v280
        %v311 = vmul.f32 %v231, %v260
        %v312 = vmul.f32 %v232, %v264
        %v313 = vmul.f32 %v233, %v268
        %v314 = vmul.f32 %v234, %v272
        %v315 = vmul.f32 %v235, %v276
        %v316 = vmul.f32 %v236, %v280
        %v317 = vmul.f32 %v237, %v260
        %v318 = vmul.f32 %v238, %v264
        %v319 = vmul.f32 %v239, %v268
        %v320 = vmul.f32 %v240, %v272
        %v321 = vmul.f32 %v241, %v276
        %v322 = vmul.f32 %v242, %v280
        %v323 = vmul.f32 %v243, %v260
        %v324 = vmul.f32 %v244, %v264
        %v325 = vmul.f32 %v245, %v268
        %v326 = vmul.f32 %v246, %v272
        %v327 = vmul.f32 %v247, %v276
        %v328 = vmul.f32 %v248, %v280
        %v329 = vmul.f32 %v249, %v260
        %v330 = vmul.f32 %v250, %v264
        %v331 = vmul.f32 %v251, %v268
        %v332 = vmul.f32 %v252, %v272
        %v333 = vmul.f32 %v253, %v276
        %v334 = vmul.f32 %v254, %v280
        %335 = vst [vmem:[%s201] sm:$0xff] %v287
        %336 = vst [vmem:[%s201 + $0x8] sm:$0xff] %v288
        %337 = vst [vmem:[%s201 + $0x10] sm:$0xff] %v289
        %338 = vst [vmem:[%s201 + $0x18] sm:$0xff] %v290
        %339 = vst [vmem:[%s201 + $0x20] sm:$0xff] %v291
        %340 = vst [vmem:[%s201 + $0x28] sm:$0xff] %v292
        %341 = vst [vmem:[%s201 + $0x30] sm:$0xff] %v293
        %342 = vst [vmem:[%s201 + $0x38] sm:$0xff] %v294
        %343 = vst [vmem:[%s201 + $0x40] sm:$0xff] %v295
        %344 = vst [vmem:[%s201 + $0x48] sm:$0xff] %v296
        %345 = vst [vmem:[%s201 + $0x50] sm:$0xff] %v297
        %346 = vst [vmem:[%s201 + $0x58] sm:$0xff] %v298
        %347 = vst [vmem:[%s201 + $0x60] sm:$0xff] %v299
        %348 = vst [vmem:[%s201 + $0x68] sm:$0xff] %v300
        %349 = vst [vmem:[%s201 + $0x70] sm:$0xff] %v301
        %350 = vst [vmem:[%s201 + $0x78] sm:$0xff] %v302
        %351 = vst [vmem:[%s201 + $0x80] sm:$0xff] %v303
        %352 = vst [vmem:[%s201 + $0x88] sm:$0xff] %v304
        %353 = vst [vmem:[%s201 + $0x90] sm:$0xff] %v305
        %354 = vst [vmem:[%s201 + $0x98] sm:$0xff] %v306
        %355 = vst [vmem:[%s201 + $0xa0] sm:$0xff] %v307
        %356 = vst [vmem:[%s201 + $0xa8] sm:$0xff] %v308
        %357 = vst [vmem:[%s201 + $0xb0] sm:$0xff] %v309
        %358 = vst [vmem:[%s201 + $0xb8] sm:$0xff] %v310
        %359 = vst [vmem:[%s201 + $0xc0] sm:$0xff] %v311
        %360 = vst [vmem:[%s201 + $0xc8] sm:$0xff] %v312
        %361 = vst [vmem:[%s201 + $0xd0] sm:$0xff] %v313
        %362 = vst [vmem:[%s201 + $0xd8] sm:$0xff] %v314
        %363 = vst [vmem:[%s201 + $0xe0] sm:$0xff] %v315
        %364 = vst [vmem:[%s201 + $0xe8] sm:$0xff] %v316
        %365 = vst [vmem:[%s201 + $0xf0] sm:$0xff] %v317
        %366 = vst [vmem:[%s201 + $0xf8] sm:$0xff] %v318
        %367 = vst [vmem:[%s201 + $0x100] sm:$0xff] %v319
        %368 = vst [vmem:[%s201 + $0x108] sm:$0xff] %v320
        %369 = vst [vmem:[%s201 + $0x110] sm:$0xff] %v321
        %370 = vst [vmem:[%s201 + $0x118] sm:$0xff] %v322
        %371 = vst [vmem:[%s201 + $0x120] sm:$0xff] %v323
        %372 = vst [vmem:[%s201 + $0x128] sm:$0xff] %v324
        %373 = vst [vmem:[%s201 + $0x130] sm:$0xff] %v325
        %374 = vst [vmem:[%s201 + $0x138] sm:$0xff] %v326
        %375 = vst [vmem:[%s201 + $0x140] sm:$0xff] %v327
        %376 = vst [vmem:[%s201 + $0x148] sm:$0xff] %v328
        %377 = vst [vmem:[%s201 + $0x150] sm:$0xff] %v329
        %378 = vst [vmem:[%s201 + $0x158] sm:$0xff] %v330
        %379 = vst [vmem:[%s201 + $0x160] sm:$0xff] %v331
        %380 = vst [vmem:[%s201 + $0x168] sm:$0xff] %v332
        %381 = vst [vmem:[%s201 + $0x170] sm:$0xff] %v333
        %382 = vst [vmem:[%s201 + $0x178] sm:$0xff] %v334
        %s383 = sand.u32 %s96, 1
        %s384 = scalar_lea.sflag [#allocation4], %s383
        %s385 = sand.u32 %s96, 1
        %s386 = smul.addr %s385, 384
        %s387 = scalar_lea.vmem [#allocation7], %s386
        // Predicated region
        $region37: #{tpu_custom_call.1} parent=27 // pred_check
          %p388 = pneg %p106
        $region38: #{tpu_custom_call.1} parent=27 // pred_check_branch
          %390 = sbr.rel (%p388) target = $region40
        $region39: #{tpu_custom_call.1} parent=27 // pred_region
          %s391 = smul.u32 8, %s24
          %s392 = smul.u32 6, %s25
          %s394 = ssub.s32 6144, 6144
          %395 = vsyncadd %s384, %s394
          %s396 = smul.addr %s391, 6
          %s397 = sadd.s32 %s392, %s396
          %s398 = smul.addr %s397, 128
          %s399 = scalar_lea.hbm %s2, %s398
          %s400 = sshll.u32 %s387, 4
          %s401 = int_to_ptr.vmem [resolvable:$true] %s400
          %406 = dma.vmem_to_hbm [thread:$0]  %s401, 6144, %s399, %s384, 768, 768, 48
        $region40: #{tpu_custom_call.1} parent=27 // pred_fallthru
          _
      $region28: #{tpu_custom_call.1} parent=5 // pred_fallthru
        _
      %p407 = scmp.le.s32.totalorder 2, %s15
      // Predicated region
      $region41: #{tpu_custom_call.1} parent=5 // pred_check
        %p408 = pneg %p407
      $region42: #{tpu_custom_call.1} parent=5 // pred_check_branch
        %410 = sbr.rel (%p408) target = $region44
      $region43: #{tpu_custom_call.1} parent=5 // pred_region
        %s411 = ssub.s32 %s15, 2
        // Predicated region
        $region45: #{tpu_custom_call.1} parent=43 // pred_check
          %p412 = pneg %p112
        $region46: #{tpu_custom_call.1} parent=43 // pred_check_branch
          %414 = sbr.rel (%p412) target = $region48
        $region47: #{tpu_custom_call.1} parent=43 // pred_region
          %s415 = sand.u32 %s97, 1
          %s416 = scalar_lea.sflag [#allocation4], %s415
          %s417 = sand.u32 %s97, 1
          %s418 = smul.addr %s417, 384
          %s419 = scalar_lea.vmem [#allocation7], %s418
          %420 = dma.done %s416, 6144
        $region48: #{tpu_custom_call.1} parent=43 // pred_fallthru
          _
      $region44: #{tpu_custom_call.1} parent=5 // pred_fallthru
        _
    $region6: #{tpu_custom_call.1} parent=1 // loop_footer
      %s19 = sadd.s32 1, %s15
    $region7: #{tpu_custom_call.1} parent=1 // loop_footer_branch
      %14 = sbr.rel target = $region3
    $region8: #{tpu_custom_call.1} parent=1 // loop_exit
      _
    %421 = vsyncpa [#allocation3], 1
    %s422 = scalar_lea.sflag [#allocation3], 1
    %423 = vsyncpa %s422, 1
    %424 = vsyncpa [#allocation6], 1
    %425 = vsyncpa [#allocation4], 1
    %s426 = scalar_lea.sflag [#allocation4], 1
    %427 = vsyncpa %s426, 1

</llo_original>
